<compile_context>
chip_gen: v6e
topology: v6e:2x2x1
jax: 0.10.0
libtpu: 0.0.40
codegen_flags: <defaults>
</compile_context>

<pallas_src>
import functools

import jax
import jax.numpy as jnp
from jax.experimental import pallas as pl
from jax.experimental.pallas import tpu as pltpu

GAMMA = 1.5
ALPHA = 0.25
LANE = 128
PAD_LOGIT = -1e4        # exp(-1e4) == 0 in f32 -> padded lanes add exactly 0


def _device_defaults():
    """(max_row_tile, num_splits) picked from the local TPU generation."""
    try:
        kind = jax.devices()[0].device_kind.lower()
    except Exception:  # no devices / CPU fallback during tracing tools
        kind = ""
    is_v7 = ("v7" in kind) or ("7x" in kind) or ("tpu7" in kind)
    if is_v7:
        return 4096, 2      # 2 TensorCores; 3.2 TB/s HBM wants bigger tiles
    return 2048, 1          # single TensorCore on v5e / v6e


def _focal_loss_kernel(pred_ref, true_ref, out_ref, *, gamma, alpha,
                       valid_rows, row_tile, blocks_per_split, need_mask,
                       out_rows):
    i = pl.program_id(1)

    @pl.when(i == 0)
    def _():
        out_ref[...] = jnp.zeros_like(out_ref)

    x = pred_ref[...].astype(jnp.float32)
    y = true_ref[...].astype(jnp.float32)

    # BCEWithLogitsLoss(reduction='none'): max(x,0) - x*y + log(1 + exp(-|x|))
    e = jnp.exp(-jnp.abs(x))                           # EUP #1 (reused below)
    bce = jnp.maximum(x, 0.0) - x * y + jnp.log1p(e)   # EUP #2 (log1p)

    # sigmoid(x) rebuilt from e = exp(-|x|):
    #   sigmoid(|x|) = 1/(1+e);  sigmoid(x) = where(x >= 0, 1/(1+e), e/(1+e))
    d = 1.0 + e
    r = pl.reciprocal(d, approx=True)                  # EUP #3
    r = r * (2.0 - d * r)                              # one Newton step (VPU)
    p = jnp.where(x >= 0.0, r, e * r)

    # 1 - p_t = p + y*(1 - 2p)   (exact rewrite, fewer VALU ops)
    one_minus_pt = p + y * (1.0 - 2.0 * p)
    # alpha_factor = (1-a) + y*(2a-1)   (constants folded at trace time)
    alpha_factor = (1.0 - alpha) + y * (2.0 * alpha - 1.0)

    # (1 - p_t) ** gamma without the exp/log pair a non-integer pow lowers to.
    if gamma == 1.5:
        mod = one_minus_pt * jnp.sqrt(one_minus_pt)    # EUP #4
    elif gamma == 2.0:
        mod = one_minus_pt * one_minus_pt
    elif gamma == 1.0:
        mod = one_minus_pt
    elif gamma == 0.0:
        mod = 1.0
    else:
        mod = jnp.power(one_minus_pt, gamma)

    loss = bce * (alpha_factor * mod)

    if need_mask:
        # Zero contributions from (a) rows past the end of the (M,128) slab in
        # a ragged last block (their contents are undefined) and (b) fully
        # duplicated blocks created when blocks % num_splits != 0 (their
        # index_map is clamped to the last real block).
        gb = pl.program_id(0) * blocks_per_split + i
        limit = valid_rows - gb * row_tile             # scalar, may be <= 0
        rows = jax.lax.broadcasted_iota(jnp.int32, loss.shape, 0)
        loss = jnp.where(rows < limit, loss, 0.0)

    if out_rows == 8:
        # Pure VPU vreg adds (sublane axis kept intact); cross-sublane /
        # cross-lane fold of the tiny partials happens in the wrapper.
        partial = loss.reshape(-1, 8, loss.shape[-1]).sum(axis=0)
    else:
        # Single-block small-input path (row_tile == M, not a multiple of 8).
        partial = jnp.sum(loss, axis=0, keepdims=True)
    out_ref[...] += partial[None]


def focal_loss(pred, true, gamma=GAMMA, alpha=ALPHA, reduction="mean",
               *, max_row_tile=None, num_splits=None):
    """Focal loss over a BCE-with-logits base loss (YOLO default: mean)."""
    assert pred.shape == true.shape
    n_elems = pred.size
    assert n_elems > 0

    dflt_tile, dflt_splits = _device_defaults()
    max_row_tile = dflt_tile if max_row_tile is None else max_row_tile
    num_splits = dflt_splits if num_splits is None else num_splits

    # ---- flatten (free reshape); pad ONLY if numel % 128 != 0 --------------
    flat_p = pred.reshape(-1)
    flat_t = true.reshape(-1)
    m = -(-n_elems // LANE)                       # rows of 128 lanes needed
    if n_elems % LANE:
        # Ragged lane count: pad the flat slab to the next multiple of 128.
        # logit=-1e4 / target=0 contributes exactly zero loss in f32
        # (exp(-1e4) == 0), so padded lanes need no masking or correction.
        pad = m * LANE - n_elems
        if jnp.issubdtype(flat_p.dtype, jnp.floating):
            pad_logit = float(max(PAD_LOGIT, float(jnp.finfo(flat_p.dtype).min)))
        else:
            pad_logit = PAD_LOGIT
        flat_p = jnp.concatenate(
            [flat_p, jnp.full((pad,), pad_logit, dtype=flat_p.dtype)])
        flat_t = jnp.concatenate(
            [flat_t, jnp.zeros((pad,), dtype=flat_t.dtype)])
    pred2d = flat_p.reshape(m, LANE)              # free when no pad was needed
    true2d = flat_t.reshape(m, LANE)

    # ---- tiling choices (all static Python) --------------------------------
    # If the whole slab fits in one tile, take it exactly (block == full dim is
    # always legal, regardless of divisibility by 8).
    row_tile = max_row_tile if m > max_row_tile else m
    blocks = -(-m // row_tile)
    if blocks < num_splits:
        num_splits = 1
    blocks_per_split = -(-blocks // num_splits)
    total_blocks = blocks_per_split * num_splits
    need_mask = (m % row_tile != 0) or (total_blocks != blocks)
    out_rows = 8 if row_tile % 8 == 0 else 1

    if total_blocks == blocks:
        def in_index_map(s, i):
            return (s * blocks_per_split + i, 0)
    else:
        last_block = blocks - 1

        def in_index_map(s, i):
            # Clamp duplicated trailing blocks onto the last real block; their
            # contribution is zeroed in-kernel via the row mask.
            return (jnp.minimum(s * blocks_per_split + i, last_block), 0)

    kernel = functools.partial(
        _focal_loss_kernel, gamma=gamma, alpha=alpha, valid_rows=m,
        row_tile=row_tile, blocks_per_split=blocks_per_split,
        need_mask=need_mask, out_rows=out_rows)

    cost = pl.CostEstimate(
        flops=25 * n_elems,
        transcendentals=4 * n_elems,
        bytes_accessed=2 * n_elems * pred2d.dtype.itemsize
        + num_splits * out_rows * LANE * 4)

    partials = pl.pallas_call(
        kernel,
        out_shape=jax.ShapeDtypeStruct((num_splits, out_rows, LANE), jnp.float32),
        grid_spec=pltpu.PrefetchScalarGridSpec(
            num_scalar_prefetch=0,
            grid=(num_splits, blocks_per_split),
            in_specs=[
                pl.BlockSpec((row_tile, LANE), in_index_map),
                pl.BlockSpec((row_tile, LANE), in_index_map),
            ],
            out_specs=pl.BlockSpec((1, out_rows, LANE), lambda s, i: (s, 0, 0)),
        ),
        compiler_params=pltpu.CompilerParams(
            dimension_semantics=("parallel", "arbitrary"),
            vmem_limit_bytes=32 << 20,
        ),
        cost_estimate=cost,
    )(pred2d, true2d)

    loss_sum = jnp.sum(partials)                  # tiny cross-lane reduce

    if reduction == "mean":
        return loss_sum / jnp.float32(n_elems)
    elif reduction == "sum":
        return loss_sum
    else:
        # TODO(synk): 'none' reduction would need the per-element loss tensor
        # as the kernel output instead of per-split partial sums.
        raise NotImplementedError("only 'mean'/'sum' reductions implemented")


def _focal_loss_ref(pred, true, gamma=GAMMA, alpha=ALPHA, reduction="mean"):
    x = pred.astype(jnp.float32)
    y = true.astype(jnp.float32)
    bce = jnp.maximum(x, 0.0) - x * y + jnp.log1p(jnp.exp(-jnp.abs(x)))
    p = jax.nn.sigmoid(x)
    p_t = y * p + (1.0 - y) * (1.0 - p)
    af = y * alpha + (1.0 - y) * (1.0 - alpha)
    mf = (1.0 - p_t) ** gamma
    loss = bce * af * mf
    return jnp.mean(loss) if reduction == "mean" else jnp.sum(loss)


if __name__ == "__main__":
    key = jax.random.PRNGKey(0)
    # NCHW inputs consistent with a YOLO objectness/cls head.
    cases = [
        # exact multiple of 128 -> zero-copy, single block
        dict(shape=(2, 4, 16, 16)),
        # ragged lane count -> tail-pad path
        dict(shape=(2, 3, 13, 7)),
        # larger, multi-block, zero-copy path
        dict(shape=(2, 32, 64, 64)),
        # force small tiles + 2-way split with an odd/ragged block count to
        # exercise the in-kernel row mask and the clamped index_map
        dict(shape=(2, 33, 64, 64), max_row_tile=256, num_splits=2),
    ]
    for idx, case in enumerate(cases):
        shape = case["shape"]
        k1, k2 = jax.random.split(jax.random.fold_in(key, idx))
        pred = jax.random.normal(k1, shape, dtype=jnp.float32) * 2.0
        true = (jax.random.uniform(k2, shape) > 0.7).astype(jnp.float32)

        out = jax.block_until_ready(
            focal_loss(pred, true,
                       max_row_tile=case.get("max_row_tile"),
                       num_splits=case.get("num_splits")))
        ref = _focal_loss_ref(pred, true)
        assert jnp.allclose(out, ref, rtol=1e-4, atol=1e-6), (shape, out, ref)

    # Also check 'sum' reduction once.
    k1, k2 = jax.random.split(jax.random.fold_in(key, 99))
    pred = jax.random.normal(k1, (2, 4, 16, 16), dtype=jnp.float32) * 2.0
    true = (jax.random.uniform(k2, (2, 4, 16, 16)) > 0.7).astype(jnp.float32)
    out = jax.block_until_ready(focal_loss(pred, true, reduction="sum"))
    ref = _focal_loss_ref(pred, true, reduction="sum")
    assert jnp.allclose(out, ref, rtol=1e-4, atol=1e-5), (out, ref)

    print("KERNEL_OK")
</pallas_src>

<mosaic_0001>
module attributes {stable_mosaic.version = 11 : i64} {
  func.func @_focal_loss_kernel(%arg0: i32, %arg1: i32, %arg2: memref<16x128xf32, #tpu.memory_space<vmem>>, %arg3: memref<16x128xf32, #tpu.memory_space<vmem>>, %arg4: memref<1x8x128xf32, #tpu.memory_space<vmem>>) attributes {dimension_semantics = [#tpu.dimension_semantics<parallel>, #tpu.dimension_semantics<arbitrary>], iteration_bounds = array<i64: 1, 1>, scalar_prefetch = 0 : i64, scratch_operands = 0 : i64, tpu.core_type = #tpu.core_type<tc>, window_params = [{transform_indices = @transform_0, window_bounds = array<i64: 16, 128>}, {transform_indices = @transform_1, window_bounds = array<i64: 16, 128>}, {transform_indices = @transform_2, window_bounds = array<i64: 1, 8, 128>}]} {
    %c0_i32 = arith.constant 0 : i32
    %0 = arith.cmpi eq, %arg1, %c0_i32 : i32
    %1 = arith.extui %0 : i1 to i32
    %c0_i32_0 = arith.constant 0 : i32
    %2 = arith.cmpi ne, %1, %c0_i32_0 : i32
    scf.if %2 {
      %cst_19 = arith.constant 0.000000e+00 : f32
      %46 = vector.broadcast %cst_19 : f32 to vector<1x8x128xf32>
      %c0_20 = arith.constant 0 : index
      %c0_21 = arith.constant 0 : index
      %c0_22 = arith.constant 0 : index
      %47 = vector.load %arg4[%c0_20, %c0_21, %c0_22] : memref<1x8x128xf32, #tpu.memory_space<vmem>>, vector<1x8x128xf32>
      tpu.vector_store %arg4[%c0_20, %c0_21, %c0_22], %46 {strides = array<i32>} : memref<1x8x128xf32, #tpu.memory_space<vmem>>, vector<1x8x128xf32>,
    } else {
    }
    %c0 = arith.constant 0 : index
    %c0_1 = arith.constant 0 : index
    %3 = vector.load %arg2[%c0, %c0_1] : memref<16x128xf32, #tpu.memory_space<vmem>>, vector<16x128xf32>
    %c0_2 = arith.constant 0 : index
    %c0_3 = arith.constant 0 : index
    %4 = vector.load %arg3[%c0_2, %c0_3] : memref<16x128xf32, #tpu.memory_space<vmem>>, vector<16x128xf32>
    %5 = math.absf %3 : vector<16x128xf32>
    %cst = arith.constant 0.000000e+00 : f32
    %6 = vector.broadcast %cst : f32 to vector<16x128xf32>
    %7 = arith.subf %6, %5 : vector<16x128xf32>
    %8 = math.exp %7 : vector<16x128xf32>
    %cst_4 = arith.constant 0.000000e+00 : f32
    %9 = vector.broadcast %cst_4 : f32 to vector<16x128xf32>
    %10 = arith.maximumf %3, %9 : vector<16x128xf32>
    %11 = arith.mulf %3, %4 : vector<16x128xf32>
    %12 = arith.subf %10, %11 : vector<16x128xf32>
    %13 = math.log1p %8 : vector<16x128xf32>
    %14 = arith.addf %12, %13 : vector<16x128xf32>
    %cst_5 = arith.constant 1.000000e+00 : f32
    %15 = vector.broadcast %cst_5 : f32 to vector<16x128xf32>
    %16 = arith.addf %15, %8 : vector<16x128xf32>
    %17 = tpu.reciprocal %16 {approx = true} : vector<16x128xf32> -> vector<16x128xf32>
    %18 = arith.mulf %16, %17 : vector<16x128xf32>
    %cst_6 = arith.constant 2.000000e+00 : f32
    %19 = vector.broadcast %cst_6 : f32 to vector<16x128xf32>
    %20 = arith.subf %19, %18 : vector<16x128xf32>
    %21 = arith.mulf %17, %20 : vector<16x128xf32>
    %cst_7 = arith.constant 0.000000e+00 : f32
    %22 = vector.broadcast %cst_7 : f32 to vector<16x128xf32>
    %23 = arith.cmpf oge, %3, %22 : vector<16x128xf32>
    %24 = arith.mulf %8, %21 : vector<16x128xf32>
    %25 = arith.select %23, %21, %24 : vector<16x128xi1>, vector<16x128xf32>
    %cst_8 = arith.constant 2.000000e+00 : f32
    %26 = vector.broadcast %cst_8 : f32 to vector<16x128xf32>
    %27 = arith.mulf %26, %25 : vector<16x128xf32>
    %cst_9 = arith.constant 1.000000e+00 : f32
    %28 = vector.broadcast %cst_9 : f32 to vector<16x128xf32>
    %29 = arith.subf %28, %27 : vector<16x128xf32>
    %30 = arith.mulf %4, %29 : vector<16x128xf32>
    %31 = arith.addf %25, %30 : vector<16x128xf32>
    %cst_10 = arith.constant -5.000000e-01 : f32
    %32 = vector.broadcast %cst_10 : f32 to vector<16x128xf32>
    %33 = arith.mulf %4, %32 : vector<16x128xf32>
    %cst_11 = arith.constant 7.500000e-01 : f32
    %34 = vector.broadcast %cst_11 : f32 to vector<16x128xf32>
    %35 = arith.addf %34, %33 : vector<16x128xf32>
    %36 = math.sqrt %31 : vector<16x128xf32>
    %37 = arith.mulf %31, %36 : vector<16x128xf32>
    %38 = arith.mulf %35, %37 : vector<16x128xf32>
    %39 = arith.mulf %14, %38 : vector<16x128xf32>
    %40 = vector.shape_cast %39 : vector<16x128xf32> to vector<2x8x128xf32>
    %cst_12 = arith.constant dense<0.000000e+00> : vector<8x128xf32>
    %41 = vector.multi_reduction <add>, %40, %cst_12 [0] : vector<2x8x128xf32> to vector<8x128xf32>
    %c0_13 = arith.constant 0 : index
    %c0_14 = arith.constant 0 : index
    %c0_15 = arith.constant 0 : index
    %42 = vector.load %arg4[%c0_13, %c0_14, %c0_15] : memref<1x8x128xf32, #tpu.memory_space<vmem>>, vector<1x8x128xf32>
    %43 = vector.shape_cast %41 : vector<8x128xf32> to vector<1x8x128xf32>
    %44 = arith.addf %42, %43 : vector<1x8x128xf32>
    %c0_16 = arith.constant 0 : index
    %c0_17 = arith.constant 0 : index
    %c0_18 = arith.constant 0 : index
    %45 = vector.load %arg4[%c0_16, %c0_17, %c0_18] : memref<1x8x128xf32, #tpu.memory_space<vmem>>, vector<1x8x128xf32>
    tpu.vector_store %arg4[%c0_16, %c0_17, %c0_18], %44 {strides = array<i32>} : memref<1x8x128xf32, #tpu.memory_space<vmem>>, vector<1x8x128xf32>,
    return
  }
  func.func @transform_0(%arg0: i32, %arg1: i32) -> (i32, i32) {
    %c1_i32 = arith.constant 1 : i32
    %0 = arith.muli %arg0, %c1_i32 : i32
    %1 = arith.addi %0, %arg1 : i32
    %c0_i32 = arith.constant 0 : i32
    %c0_i32_0 = arith.constant 0 : i32
    return %1, %c0_i32 : i32, i32
  }
  func.func @transform_1(%arg0: i32, %arg1: i32) -> (i32, i32) {
    %c1_i32 = arith.constant 1 : i32
    %0 = arith.muli %arg0, %c1_i32 : i32
    %1 = arith.addi %0, %arg1 : i32
    %c0_i32 = arith.constant 0 : i32
    %c0_i32_0 = arith.constant 0 : i32
    return %1, %c0_i32 : i32, i32
  }
  func.func @transform_2(%arg0: i32, %arg1: i32) -> (i32, i32, i32) {
    %c0_i32 = arith.constant 0 : i32
    %c0_i32_0 = arith.constant 0 : i32
    %c0_i32_1 = arith.constant 0 : i32
    return %arg0, %c0_i32, %c0_i32_0 : i32, i32, i32
  }
}

</mosaic_0001>

<llo_original>
// kernel: tpu_custom_call.1
$region0: #{tpu_custom_call.1}
  #allocation0 [shape = 'u32[]', space=smem, size = 0x4, offset = 0x4, fixed_abs, tag = 'smem constant byte address 0x4 - core index']
  #allocation1 [shape = 'u32[144,128]{1,0:T(1,128)}', space=vmem, size = 0x12000, scoped, tag = 'internal scratch']
  %s0 = inlined_call_operand.hbm [shape: f32[16,128], index: 0, kind: input, shape index: {}]
  %s1 = inlined_call_operand.hbm [shape: f32[16,128], index: 1, kind: input, shape index: {}]
  %s2 = inlined_call_operand.hbm [shape: f32[1,8,128], index: 2, kind: output, shape index: {}]
  %s3 = sld [smem:[#allocation0]]
  $region30: #{tpu_custom_call.1} parent=0
    _
  %s5 = ssub.s32 1, %s3
  %s6 = scalar_select 0, %s5, %s3
  $region1: #{tpu_custom_call.1} parent=0
    #allocation2 [shape = 'u8[8192]{0}', space=vmem, size = 0x2000, scoped, tag = 'input window, operand 0, single buffered']
    #allocation3 [shape = 's32[1]{0}', space=sflag, size = 0x4, scoped, tag = 'scoped memory for tpu_custom_call.1']
    #allocation4 [shape = 's32[1]{0}', space=sflag, size = 0x4, scoped, tag = 'scoped memory for tpu_custom_call.1']
    #allocation5 [shape = 'u8[8192]{0}', space=vmem, size = 0x2000, scoped, tag = 'input window, operand 1, single buffered']
    #allocation6 [shape = 's32[1]{0}', space=sflag, size = 0x4, scoped, tag = 'scoped memory for tpu_custom_call.1']
    #allocation7 [shape = 'u8[4096]{0}', space=vmem, size = 0x1000, scoped, tag = 'output window, operand 0, single buffered']
    %7 = vsyncpa [#allocation3], 0
    %8 = vsyncpa [#allocation6], 0
    %9 = vsyncpa [#allocation4], 0
    // Predicated region
    $region2: #{tpu_custom_call.1} parent=1 // pred_check
      _
    $region3: #{tpu_custom_call.1} parent=1 // pred_check_branch
      %11 = sbr.rel (0) target = $region5
    $region4: #{tpu_custom_call.1} parent=1 // pred_region
      %s12 = sadd.s32 0, 0
      %s13 = smul.u32 2, %s12
      %s15 = ssub.s32 256, 256
      %16 = vsyncadd [#allocation3], %s15
      %s17 = smul.addr %s13, 128
      %s18 = scalar_lea.hbm %s0, %s17
      %s19 = sshll.u32 [#allocation2], 4
      %s20 = int_to_ptr.vmem [resolvable:$true] %s19
      %25 = dma.hbm_to_vmem [thread:$0]  %s18, 256, %s20, [#allocation3], 128, 128, 8
    $region5: #{tpu_custom_call.1} parent=1 // pred_fallthru
      _
    // Predicated region
    $region6: #{tpu_custom_call.1} parent=1 // pred_check
      _
    $region7: #{tpu_custom_call.1} parent=1 // pred_check_branch
      %27 = sbr.rel (0) target = $region9
    $region8: #{tpu_custom_call.1} parent=1 // pred_region
      %s28 = sadd.s32 0, 0
      %s29 = smul.u32 2, %s28
      %s31 = ssub.s32 256, 256
      %32 = vsyncadd [#allocation6], %s31
      %s33 = smul.addr %s29, 128
      %s34 = scalar_lea.hbm %s1, %s33
      %s35 = sshll.u32 [#allocation5], 4
      %s36 = int_to_ptr.vmem [resolvable:$true] %s35
      %41 = dma.hbm_to_vmem [thread:$0]  %s34, 256, %s36, [#allocation6], 128, 128, 8
    $region9: #{tpu_custom_call.1} parent=1 // pred_fallthru
      _
    // Predicated region
    $region10: #{tpu_custom_call.1} parent=1 // pred_check
      _
    $region11: #{tpu_custom_call.1} parent=1 // pred_check_branch
      %43 = sbr.rel (0) target = $region13
    $region12: #{tpu_custom_call.1} parent=1 // pred_region
      %44 = dma.done [#allocation3], 256
    $region13: #{tpu_custom_call.1} parent=1 // pred_fallthru
      _
    // Predicated region
    $region14: #{tpu_custom_call.1} parent=1 // pred_check
      _
    $region15: #{tpu_custom_call.1} parent=1 // pred_check_branch
      %46 = sbr.rel (0) target = $region17
    $region16: #{tpu_custom_call.1} parent=1 // pred_region
      %47 = dma.done [#allocation6], 256
    $region17: #{tpu_custom_call.1} parent=1 // pred_fallthru
      _
    %s48 = sadd.s32 0, 0
    %s49 = smul.u32 2, %s48
    %s50 = sadd.s32 0, 0
    %s51 = smul.u32 2, %s50
    %p52 = scmp.eq.s32.totalorder 0, 0
    // Predicated region
    $region18: #{tpu_custom_call.1} parent=1 // pred_check
      %p53 = pneg %p52
    $region19: #{tpu_custom_call.1} parent=1 // pred_check_branch
      %55 = sbr.rel (%p53) target = $region21
    $region20: #{tpu_custom_call.1} parent=1 // pred_region
      %56 = vst [vmem:[#allocation7] sm:$0xff] 0.0
    $region21: #{tpu_custom_call.1} parent=1 // pred_fallthru
      _
    %v57 = vld [vmem:[#allocation2] sm:$0xff]
    %v58 = vld [vmem:[#allocation2 + $0x8] sm:$0xff]
    %v59 = vld [vmem:[#allocation5] sm:$0xff]
    %v60 = vld [vmem:[#allocation5 + $0x8] sm:$0xff]
    %v61 = vand.u32 2147483647, %v57
    %v62 = vand.u32 2147483647, %v58
    %v63 = vsub.f32 0.0, %v61
    %v64 = vsub.f32 0.0, %v62
    %v65 = vmul.f32 %v63, 1.442695
    %v66 = vpow.pop %v65
    %v67 = vmul.f32 %v64, 1.442695
    %v68 = vpow.pop %v67
    %v69 = vmax.f32 %v57, 0.0
    %v70 = vmax.f32 %v58, 0.0
    %v71 = vmul.f32 %v57, %v59
    %v72 = vmul.f32 %v58, %v60
    %v73 = vsub.f32 %v69, %v71
    %v74 = vsub.f32 %v70, %v72
    %v75 = vadd.f32 %v66, 1.0
    %v76 = vlog2.pop %v75
    %v77 = vmul.f32 %v76, 0.6931472
    %v78 = vmul.f32 -0.5, %v66
    %v79 = vadd.f32 %v78, 1.0
    %v80 = vmul.f32 %v79, %v66
    %v81 = vand.u32 2147483647, %v66
    %vm82 = vcmp.lt.f32.partialorder %v81, 0.0004427343
    %v83 = vsel %vm82, %v80, %v77
    %v84 = vadd.f32 %v68, 1.0
    %v85 = vlog2.pop %v84
    %v86 = vmul.f32 %v85, 0.6931472
    %v87 = vmul.f32 -0.5, %v68
    %v88 = vadd.f32 %v87, 1.0
    %v89 = vmul.f32 %v88, %v68
    %v90 = vand.u32 2147483647, %v68
    %vm91 = vcmp.lt.f32.partialorder %v90, 0.0004427343
    %v92 = vsel %vm91, %v89, %v86
    %v93 = vadd.f32 %v73, %v83
    %v94 = vadd.f32 %v74, %v92
    %v95 = vadd.f32 %v66, 1.0
    %v96 = vadd.f32 %v68, 1.0
    %v97 = vrcp.pop %v95
    %v98 = vrcp.pop %v96
    %v99 = vmul.f32 %v95, %v97
    %v100 = vmul.f32 %v96, %v98
    %v101 = vsub.f32 2.0, %v99
    %v102 = vsub.f32 2.0, %v100
    %v103 = vmul.f32 %v97, %v101
    %v104 = vmul.f32 %v98, %v102
    %vm105 = vcmp.ge.f32.partialorder %v57, 0.0
    %vm106 = vcmp.ge.f32.partialorder %v58, 0.0
    %v107 = vmul.f32 %v66, %v103
    %v108 = vmul.f32 %v68, %v104
    %v109 = vsel %vm105, %v103, %v107
    %v110 = vsel %vm106, %v104, %v108
    %v111 = vmul.f32 %v109, 2.0
    %v112 = vmul.f32 %v110, 2.0
    %v113 = vsub.f32 1.0, %v111
    %v114 = vsub.f32 1.0, %v112
    %v115 = vmul.f32 %v59, %v113
    %v116 = vmul.f32 %v60, %v114
    %v117 = vadd.f32 %v109, %v115
    %v118 = vadd.f32 %v110, %v116
    %v119 = vmul.f32 %v59, -0.5
    %v120 = vmul.f32 %v60, -0.5
    %v121 = vadd.f32 %v119, 0.75
    %v122 = vadd.f32 %v120, 0.75
    %v123 = vrsqrt.pop %v117
    %v124 = vmul.f32 %v117, %v123
    %vm125 = vcmp.eq.f32.partialorder %v117, inf
    %v126 = vsel %vm125, %v117, %v124
    %vm127 = vcmp.eq.f32.partialorder %v117, 0.0
    %v128 = vand.u32 %v117, 2147483648
    %v129 = vsel %vm127, %v128, %v126
    %v130 = vrsqrt.pop %v118
    %v131 = vmul.f32 %v118, %v130
    %vm132 = vcmp.eq.f32.partialorder %v118, inf
    %v133 = vsel %vm132, %v118, %v131
    %vm134 = vcmp.eq.f32.partialorder %v118, 0.0
    %v135 = vand.u32 %v118, 2147483648
    %v136 = vsel %vm134, %v135, %v133
    %v137 = vmul.f32 %v117, %v129
    %v138 = vmul.f32 %v118, %v136
    %v139 = vmul.f32 %v121, %v137
    %v140 = vmul.f32 %v122, %v138
    %v141 = vmul.f32 %v93, %v139
    %v142 = vmul.f32 %v94, %v140
    %v143 = vadd.f32 %v141, %v142
    %v144 = vld [vmem:[#allocation7] sm:$0xff]
    %v145 = vadd.f32 %v144, %v143
    %146 = vst [vmem:[#allocation7] sm:$0xff] %v145
    // Predicated region
    $region22: #{tpu_custom_call.1} parent=1 // pred_check
      _
    $region23: #{tpu_custom_call.1} parent=1 // pred_check_branch
      %148 = sbr.rel (0) target = $region25
    $region24: #{tpu_custom_call.1} parent=1 // pred_region
      %s150 = ssub.s32 128, 128
      %151 = vsyncadd [#allocation4], %s150
      %s153 = sshll.u32 [#allocation7], 4
      %s154 = int_to_ptr.vmem [resolvable:$true] %s153
      %156 = dma.vmem_to_hbm [thread:$0]  %s154, 128, %s2, [#allocation4]
    $region25: #{tpu_custom_call.1} parent=1 // pred_fallthru
      _
    // Predicated region
    $region26: #{tpu_custom_call.1} parent=1 // pred_check
      _
    $region27: #{tpu_custom_call.1} parent=1 // pred_check_branch
      %158 = sbr.rel (0) target = $region29
    $region28: #{tpu_custom_call.1} parent=1 // pred_region
      %159 = dma.done [#allocation4], 128
    $region29: #{tpu_custom_call.1} parent=1 // pred_fallthru
      _
    %160 = vsyncpa [#allocation3], 1
    %161 = vsyncpa [#allocation6], 1
    %162 = vsyncpa [#allocation4], 1

</llo_original>
